<compile_context>
chip_gen: v6e
topology: v6e:2x2x1
jax: 0.10.0
libtpu: 0.0.40
codegen_flags: <defaults>
</compile_context>

<pallas_src>
import functools

import jax
import jax.numpy as jnp
from jax.experimental import pallas as pl
from jax.experimental.pallas import tpu as pltpu

_LANES = 128


def _leaky_relu_kernel(x_ref, o_ref, *, negative_slope):
    x = x_ref[...]
    o_ref[...] = jnp.where(x >= 0, x, x * jnp.asarray(negative_slope, x.dtype))


def _sublane_granule(itemsize):
    # Sublane packing: 8 rows for 32-bit, 16 for bf16/fp16, 32 for 8-bit dtypes.
    return max(8, 32 // itemsize)


def _target_block_bytes():
    """Generation-aware per-buffer tile target (4 buffers live: in+out, x2)."""
    try:
        kind = jax.devices()[0].device_kind.lower()
    except Exception:  # non-TPU backend / interpret fallback
        return 2 * 1024 * 1024
    if "v5 lite" in kind or "v5e" in kind or "v5lite" in kind:
        # v5e: 16 MiB default scoped VMEM -> keep 4 buffers ~= 12 MiB.
        return 3 * 1024 * 1024
    if any(tag in kind for tag in ("v6", "v7", "v5p", "v4")):
        # v6e / v7x (and v4 / v5p): 8 MiB tiles -> 4 buffers ~= 32 MiB,
        # amortizing the ~0.35 us per-grid-step overhead against 1.3-3.2 TB/s.
        return 8 * 1024 * 1024
    return 2 * 1024 * 1024


def _run_2d(x2d, negative_slope, block_bytes):
    """Run the elementwise kernel over a 2-D (rows, lanes) view."""
    rows, lanes = x2d.shape
    itemsize = jnp.dtype(x2d.dtype).itemsize
    granule = _sublane_granule(itemsize)

    # Largest block (multiple of the sublane granule) under the byte target.
    max_rows = max(granule, (block_bytes // (lanes * itemsize)) // granule * granule)
    block_rows = min(max_rows, pl.cdiv(rows, granule) * granule)
    if block_rows >= rows:
        block_rows = rows  # single full-extent block (always legal)
    grid = (pl.cdiv(rows, block_rows),)  # last block may be partial (masked)

    n = rows * lanes
    block_bytes_actual = block_rows * lanes * itemsize
    return pl.pallas_call(
        functools.partial(_leaky_relu_kernel, negative_slope=negative_slope),
        out_shape=jax.ShapeDtypeStruct((rows, lanes), x2d.dtype),
        grid_spec=pltpu.PrefetchScalarGridSpec(
            num_scalar_prefetch=0,
            grid=grid,
            in_specs=[pl.BlockSpec((block_rows, lanes), lambda i: (i, 0))],
            out_specs=pl.BlockSpec((block_rows, lanes), lambda i: (i, 0)),
        ),
        compiler_params=pltpu.CompilerParams(
            # NOTE(v7x): if a profile shows only one TensorCore's DMA engines
            # busy, switch this axis to pltpu.CORE_PARALLEL to shard across
            # both TCs; plain "parallel" is kept here as the safe default.
            dimension_semantics=("parallel",),
            # 2 buffers x 2 arrays (in + out) x block, plus headroom.
            vmem_limit_bytes=int(4 * block_bytes_actual + (4 << 20)),
        ),
        cost_estimate=pl.CostEstimate(
            flops=n, transcendentals=0, bytes_accessed=2 * n * itemsize
        ),
    )(x2d)


@functools.partial(jax.jit, static_argnames=("negative_slope",))
def leaky_relu(x, negative_slope=0.01):
    """Elementwise LeakyReLU via Pallas (float dtypes; layout-agnostic)."""
    orig_shape = x.shape
    n = x.size
    if n == 0:
        return x

    itemsize = jnp.dtype(x.dtype).itemsize
    granule = _sublane_granule(itemsize)
    block_bytes = _target_block_bytes()

    lanes = orig_shape[-1] if x.ndim >= 2 else 0
    if x.ndim >= 2 and lanes % _LANES == 0 and granule * lanes * itemsize <= block_bytes:
        # Layout-preserving path: keep the existing lane dimension and collapse
        # leading dims into the sublane axis -> no physical relayout copy
        # around the pallas_call.
        out = _run_2d(x.reshape(-1, lanes), negative_slope, block_bytes)
        return out.reshape(orig_shape)

    # Generic path: flatten and repack onto 128 lanes.  Pad by at most
    # (_LANES - 1) elements; the last grid step is a partial edge block, so
    # there is no full-tile padding and no extra full-tensor pad/slice pass.
    x_flat = x.reshape(-1)
    rem = n % _LANES
    if rem:
        x_flat = jnp.pad(x_flat, (0, _LANES - rem))
    rows = x_flat.size // _LANES
    out = _run_2d(x_flat.reshape(rows, _LANES), negative_slope, block_bytes)
    out_flat = out.reshape(-1)
    if rem:
        out_flat = out_flat[:n]
    return out_flat.reshape(orig_shape)


class LeakyReLU:
    """JAX/Pallas equivalent of torch.nn.LeakyReLU.

    `inplace` has no meaning in JAX's functional model and is ignored.
    """

    def __init__(self, negative_slope=0.01, inplace=False):
        self.negative_slope = float(negative_slope)
        self.inplace = inplace  # no in-place semantics in JAX; ignored

    def __call__(self, x):
        return leaky_relu(x, self.negative_slope)


if __name__ == "__main__":
    key = jax.random.PRNGKey(0)
    k0, k1, k2, k3 = jax.random.split(key, 4)

    mod = LeakyReLU(negative_slope=0.01)

    # Main check: NCHW-like f32 input (generic 128-lane repack path).
    x = jax.random.normal(k0, (2, 4, 16, 16), dtype=jnp.float32)
    y = jax.block_until_ready(mod(x))
    ref = jnp.where(x >= 0, x, 0.01 * x)
    assert y.shape == x.shape and y.dtype == x.dtype
    assert jnp.allclose(y, ref, atol=0, rtol=0)

    # Ragged path: size not divisible by 128 (partial edge block + tiny pad).
    x_odd = jax.random.normal(k1, (3, 5, 7), dtype=jnp.float32)
    y_odd = jax.block_until_ready(mod(x_odd))
    ref_odd = jnp.where(x_odd >= 0, x_odd, 0.01 * x_odd)
    assert y_odd.shape == x_odd.shape and y_odd.dtype == x_odd.dtype
    assert jnp.allclose(y_odd, ref_odd, atol=0, rtol=0)

    # bf16 processed natively (halved HBM traffic).
    x_bf16 = jax.random.normal(k2, (2, 4, 16, 16), dtype=jnp.bfloat16)
    y_bf16 = jax.block_until_ready(mod(x_bf16))
    ref_bf16 = jnp.where(x_bf16 >= 0, x_bf16, x_bf16 * jnp.bfloat16(0.01))
    assert y_bf16.dtype == jnp.bfloat16
    assert jnp.allclose(
        y_bf16.astype(jnp.float32), ref_bf16.astype(jnp.float32), rtol=1e-2
    )

    # Lane-aligned last dim (layout-preserving path, no repack to 128 lanes).
    x_wide = jax.random.normal(k3, (2, 8, 256), dtype=jnp.float32)
    y_wide = jax.block_until_ready(mod(x_wide))
    ref_wide = jnp.where(x_wide >= 0, x_wide, 0.01 * x_wide)
    assert y_wide.shape == x_wide.shape and y_wide.dtype == x_wide.dtype
    assert jnp.allclose(y_wide, ref_wide, atol=0, rtol=0)

    print("KERNEL_OK")
</pallas_src>

<mosaic_0001>
module attributes {stable_mosaic.version = 11 : i64} {
  func.func @_leaky_relu_kernel(%arg0: i32, %arg1: memref<16x128xf32, #tpu.memory_space<vmem>>, %arg2: memref<16x128xf32, #tpu.memory_space<vmem>>) attributes {dimension_semantics = [#tpu.dimension_semantics<parallel>], iteration_bounds = array<i64: 1>, scalar_prefetch = 0 : i64, scratch_operands = 0 : i64, tpu.core_type = #tpu.core_type<tc>, window_params = [{transform_indices = @transform_0, window_bounds = array<i64: 16, 128>}, {transform_indices = @transform_1, window_bounds = array<i64: 16, 128>}]} {
    %c0 = arith.constant 0 : index
    %c0_0 = arith.constant 0 : index
    %0 = vector.load %arg1[%c0, %c0_0] : memref<16x128xf32, #tpu.memory_space<vmem>>, vector<16x128xf32>
    %cst = arith.constant 0.000000e+00 : f32
    %1 = vector.broadcast %cst : f32 to vector<16x128xf32>
    %2 = arith.cmpf oge, %0, %1 : vector<16x128xf32>
    %cst_1 = arith.constant 0.00999999977 : f32
    %3 = vector.broadcast %cst_1 : f32 to vector<16x128xf32>
    %4 = arith.mulf %0, %3 : vector<16x128xf32>
    %5 = arith.select %2, %0, %4 : vector<16x128xi1>, vector<16x128xf32>
    %c0_2 = arith.constant 0 : index
    %c0_3 = arith.constant 0 : index
    %6 = vector.load %arg2[%c0_2, %c0_3] : memref<16x128xf32, #tpu.memory_space<vmem>>, vector<16x128xf32>
    tpu.vector_store %arg2[%c0_2, %c0_3], %5 {strides = array<i32>} : memref<16x128xf32, #tpu.memory_space<vmem>>, vector<16x128xf32>,
    return
  }
  func.func @transform_0(%arg0: i32) -> (i32, i32) {
    %c0_i32 = arith.constant 0 : i32
    %c0_i32_0 = arith.constant 0 : i32
    return %arg0, %c0_i32 : i32, i32
  }
  func.func @transform_1(%arg0: i32) -> (i32, i32) {
    %c0_i32 = arith.constant 0 : i32
    %c0_i32_0 = arith.constant 0 : i32
    return %arg0, %c0_i32 : i32, i32
  }
}

</mosaic_0001>

<llo_original>
// kernel: leaky_relu.1
$region0: #{leaky_relu.1}
  #allocation0 [shape = 'u32[]', space=smem, size = 0x4, offset = 0x4, fixed_abs, tag = 'smem constant byte address 0x4 - core index']
  #allocation1 [shape = 'u32[144,128]{1,0:T(1,128)}', space=vmem, size = 0x12000, scoped, tag = 'internal scratch']
  %s0 = inlined_call_operand.vmem [shape: f32[16,128], index: 0, kind: input, shape index: {}]
  %s1 = inlined_call_operand.vmem [shape: f32[16,128], index: 1, kind: output, shape index: {}]
  %s2 = sld [smem:[#allocation0]]
  $region14: #{leaky_relu.1} parent=0
    _
  %s4 = ssub.s32 1, %s2
  %s5 = scalar_select 0, %s4, %s2
  // Predicated region
  $region2: #{leaky_relu.1} parent=0 // pred_check
    _
  $region3: #{leaky_relu.1} parent=0 // pred_check_branch
    %7 = sbr.rel (0) target = $region5
  $region4: #{leaky_relu.1} parent=0 // pred_region
    _
  $region5: #{leaky_relu.1} parent=0 // pred_fallthru
    _
  %v8 = vld [vmem:[%s0] sm:$0xff]
  %v9 = vld [vmem:[%s0 + $0x8] sm:$0xff]
  %vm10 = vcmp.ge.f32.partialorder %v8, 0.0
  %vm11 = vcmp.ge.f32.partialorder %v9, 0.0
  %v12 = vmul.f32 %v8, 0.01
  %v13 = vmul.f32 %v9, 0.01
  %v14 = vsel %vm10, %v8, %v12
  %v15 = vsel %vm11, %v9, %v13
  %16 = vst [vmem:[%s1] sm:$0xff] %v14
  %17 = vst [vmem:[%s1 + $0x8] sm:$0xff] %v15
  // Predicated region
  $region6: #{leaky_relu.1} parent=0 // pred_check
    _
  $region7: #{leaky_relu.1} parent=0 // pred_check_branch
    %19 = sbr.rel (0) target = $region9
  $region8: #{leaky_relu.1} parent=0 // pred_region
    _
  $region9: #{leaky_relu.1} parent=0 // pred_fallthru
    _
  // Predicated region
  $region10: #{leaky_relu.1} parent=0 // pred_check
    _
  $region11: #{leaky_relu.1} parent=0 // pred_check_branch
    %21 = sbr.rel (0) target = $region13
  $region12: #{leaky_relu.1} parent=0 // pred_region
    _
  $region13: #{leaky_relu.1} parent=0 // pred_fallthru
    _

</llo_original>
